<compile_context>
chip_gen: v5e
topology: v5e:2x2
jax: 0.10.0
libtpu: 0.0.40
codegen_flags: <defaults>
</compile_context>

<pallas_src>
import functools

import jax
import jax.numpy as jnp
from jax.experimental import pallas as pl
from jax.experimental.pallas import tpu as pltpu

LN_EPS = 1e-5  # PyTorch nn.LayerNorm default


def _round_up(x, m):
    return ((x + m - 1) // m) * m


def _pad2(x, rows, cols):
    r, c = x.shape
    return jnp.pad(x, ((0, rows - r), (0, cols - c)))


# --------------------------------------------------------------------------
# Kernel
# --------------------------------------------------------------------------
def actor_kernel(obs_ref, std_ref,
                 w_t_ref, b_t_ref, g_ref, beta_ref,
                 w1_ref, b1_ref, w2_ref, b2_ref, w3_ref, b3_ref,
                 mu_ref, std_out_ref, *, feature_dim):
    cd = w_t_ref.dtype  # MXU compute dtype (bf16); accumulation stays f32

    # ---- trunk: Linear -> LayerNorm -> Tanh -----------------------------
    x = obs_ref[...].astype(cd)
    h = jnp.dot(x, w_t_ref[...], preferred_element_type=jnp.float32) + b_t_ref[...]

    # Padded lanes of h are exactly zero (zero-padded W columns / bias), so the
    # sum over all lanes equals the sum over the real feature_dim.  Variance is
    # masked to the real lanes; padded gamma/beta are zero so padded outputs
    # stay exactly zero.
    f_pad = h.shape[-1]
    lane = jax.lax.broadcasted_iota(jnp.int32, (1, f_pad), 1)
    mask = (lane < feature_dim).astype(jnp.float32)
    inv_f = 1.0 / float(feature_dim)

    mean = jnp.sum(h, axis=-1, keepdims=True) * inv_f
    cent = h - mean
    cent_m = cent * mask
    var = jnp.sum(cent_m * cent_m, axis=-1, keepdims=True) * inv_f
    h = cent * jax.lax.rsqrt(var + LN_EPS) * g_ref[...] + beta_ref[...]
    h = jnp.tanh(h)

    # ---- policy MLP: Linear -> ReLU -> Linear -> ReLU -> Linear ---------
    z = jnp.dot(h.astype(cd), w1_ref[...], preferred_element_type=jnp.float32) + b1_ref[...]
    z = jnp.maximum(z, 0.0)
    z = jnp.dot(z.astype(cd), w2_ref[...], preferred_element_type=jnp.float32) + b2_ref[...]
    z = jnp.maximum(z, 0.0)
    z = jnp.dot(z.astype(cd), w3_ref[...], preferred_element_type=jnp.float32) + b3_ref[...]

    mu_ref[...] = jnp.tanh(z).astype(mu_ref.dtype)
    std_out_ref[...] = jnp.full(std_out_ref.shape, std_ref[0, 0],
                                dtype=std_out_ref.dtype)


# --------------------------------------------------------------------------
# Wrapper
# --------------------------------------------------------------------------
def prepare_actor_params(params, compute_dtype=jnp.bfloat16):
    """Pad lane (output-feature) dims to multiples of 128 and cast weights to
    the MXU compute dtype.  Done ONCE, not per forward call."""
    repr_dim, feature_dim = params["w_trunk"].shape
    hidden_dim = params["w_p1"].shape[1]
    action_dim = params["w_p3"].shape[1]

    f_pad = _round_up(feature_dim, 128)
    h_pad = _round_up(hidden_dim, 128)
    a_pad = _round_up(action_dim, 128)
    cd = compute_dtype

    prepped = dict(
        w_trunk=_pad2(params["w_trunk"], repr_dim, f_pad).astype(cd),
        b_trunk=_pad2(params["b_trunk"], 1, f_pad),
        ln_gamma=_pad2(params["ln_gamma"], 1, f_pad),   # padded lanes -> 0
        ln_beta=_pad2(params["ln_beta"], 1, f_pad),     # padded lanes -> 0
        w_p1=_pad2(params["w_p1"], f_pad, h_pad).astype(cd),
        b_p1=_pad2(params["b_p1"], 1, h_pad),
        w_p2=_pad2(params["w_p2"], h_pad, h_pad).astype(cd),
        b_p2=_pad2(params["b_p2"], 1, h_pad),
        w_p3=_pad2(params["w_p3"], h_pad, a_pad).astype(cd),
        b_p3=_pad2(params["b_p3"], 1, a_pad),
    )
    meta = dict(repr_dim=repr_dim, feature_dim=feature_dim,
                hidden_dim=hidden_dim, action_dim=action_dim)
    return prepped, meta


def actor_forward(obs, prepped, meta, std=0.0, block_b=None):
    """Returns (mu, std_array) — the parameters of utils.TruncatedNormal."""
    B, R = obs.shape
    a_pad = prepped["w_p3"].shape[1]
    action_dim = meta["action_dim"]
    feature_dim = meta["feature_dim"]

    # Batch tile: multiple of 8 sublanes, capped at 256 rows.
    tb = block_b if block_b is not None else min(256, _round_up(B, 8))
    tb = _round_up(tb, 8)
    b_pad = _round_up(B, tb)
    if b_pad != B:
        obs = jnp.pad(obs, ((0, b_pad - B), (0, 0)))
    grid = (b_pad // tb,)

    std_in = jnp.full((1, 1), std, jnp.float32)

    weight_args = (prepped["w_trunk"], prepped["b_trunk"],
                   prepped["ln_gamma"], prepped["ln_beta"],
                   prepped["w_p1"], prepped["b_p1"],
                   prepped["w_p2"], prepped["b_p2"],
                   prepped["w_p3"], prepped["b_p3"])

    # Weights/biases: constant index_map -> resident in VMEM across the grid.
    resident = lambda a: pl.BlockSpec(a.shape, lambda i: (0,) * a.ndim)

    in_specs = ([pl.BlockSpec((tb, R), lambda i: (i, 0)),
                 pl.BlockSpec(memory_space=pltpu.MemorySpace.SMEM)]
                + [resident(a) for a in weight_args])
    out_specs = (pl.BlockSpec((tb, a_pad), lambda i: (i, 0)),
                 pl.BlockSpec((tb, a_pad), lambda i: (i, 0)))

    # VMEM budget: resident weights + double-buffered obs tile + 2 output tiles.
    w_bytes = sum(int(a.size) * a.dtype.itemsize for a in weight_args)
    io_bytes = 2 * (tb * R * 4 + 2 * tb * a_pad * 4)
    vmem_limit = int(min(max(2 * (w_bytes + io_bytes), 32 << 20), 56 << 20))

    kernel = functools.partial(actor_kernel, feature_dim=feature_dim)

    mu, std_out = pl.pallas_call(
        kernel,
        out_shape=(jax.ShapeDtypeStruct((b_pad, a_pad), jnp.float32),
                   jax.ShapeDtypeStruct((b_pad, a_pad), jnp.float32)),
        grid=grid,
        in_specs=in_specs,
        out_specs=out_specs,
        compiler_params=pltpu.CompilerParams(
            dimension_semantics=("parallel",),
            vmem_limit_bytes=vmem_limit,
        ),
    )(obs, std_in, *weight_args)

    # TODO(synk): TruncatedNormal distribution object (sampling / log_prob with
    # clamping) has no Pallas equivalent; we return its (mu, std) parameters.
    return mu[:B, :action_dim], std_out[:B, :action_dim]


# --------------------------------------------------------------------------
# Params init (stands in for utils.weight_init)
# --------------------------------------------------------------------------
def init_actor_params(key, repr_dim, action_dim, feature_dim, hidden_dim):
    ks = jax.random.split(key, 4)

    def lin(k, fan_in, fan_out):
        w = jax.random.normal(k, (fan_in, fan_out), jnp.float32) / jnp.sqrt(fan_in)
        b = jnp.zeros((1, fan_out), jnp.float32)
        return w, b

    w_t, b_t = lin(ks[0], repr_dim, feature_dim)
    w1, b1 = lin(ks[1], feature_dim, hidden_dim)
    w2, b2 = lin(ks[2], hidden_dim, hidden_dim)
    w3, b3 = lin(ks[3], hidden_dim, action_dim)
    return dict(
        w_trunk=w_t, b_trunk=b_t,
        ln_gamma=jnp.ones((1, feature_dim), jnp.float32),
        ln_beta=jnp.zeros((1, feature_dim), jnp.float32),
        w_p1=w1, b_p1=b1,
        w_p2=w2, b_p2=b2,
        w_p3=w3, b_p3=b3,
    )


if __name__ == "__main__":
    B, repr_dim, feature_dim, hidden_dim = 8, 32, 16, 32
    action_shape = (4,)
    std_val = 0.1

    key = jax.random.PRNGKey(0)
    k_obs, k_par = jax.random.split(key)

    obs = jax.random.normal(k_obs, (B, repr_dim), jnp.float32)
    params = init_actor_params(k_par, repr_dim, action_shape[-1],
                               feature_dim, hidden_dim)

    prepped, meta = prepare_actor_params(params, compute_dtype=jnp.bfloat16)

    mu, std = actor_forward(obs, prepped, meta, std=std_val)
    jax.block_until_ready((mu, std))

    # pure-JAX reference that mirrors the bf16-MXU / f32-accumulate math
    def ref_forward(obs, p, std, cd=jnp.bfloat16):
        mm = lambda x, w: jnp.dot(x.astype(cd), w.astype(cd),
                                  preferred_element_type=jnp.float32)
        h = mm(obs, p["w_trunk"]) + p["b_trunk"]
        m = jnp.mean(h, -1, keepdims=True)
        v = jnp.mean((h - m) ** 2, -1, keepdims=True)
        h = (h - m) * jax.lax.rsqrt(v + LN_EPS) * p["ln_gamma"] + p["ln_beta"]
        h = jnp.tanh(h)
        z = jnp.maximum(mm(h, p["w_p1"]) + p["b_p1"], 0.0)
        z = jnp.maximum(mm(z, p["w_p2"]) + p["b_p2"], 0.0)
        mu_r = jnp.tanh(mm(z, p["w_p3"]) + p["b_p3"])
        return mu_r, jnp.ones_like(mu_r) * std

    mu_ref, std_ref = ref_forward(obs, params, std_val)

    assert mu.shape == (B, action_shape[-1]) and std.shape == mu.shape
    assert jnp.allclose(mu, mu_ref, atol=1e-2), "mu mismatch vs reference"
    assert jnp.allclose(std, std_ref, atol=1e-6), "std mismatch vs reference"

    print("KERNEL_OK")
</pallas_src>

<mosaic_0001>
module attributes {stable_mosaic.version = 11 : i64} {
  func.func @actor_kernel(%arg0: i32, %arg1: memref<8x32xf32, #tpu.memory_space<vmem>>, %arg2: memref<1x1xf32, #tpu.memory_space<smem>>, %arg3: memref<32x128xbf16, #tpu.memory_space<vmem>>, %arg4: memref<1x128xf32, #tpu.memory_space<vmem>>, %arg5: memref<1x128xf32, #tpu.memory_space<vmem>>, %arg6: memref<1x128xf32, #tpu.memory_space<vmem>>, %arg7: memref<128x128xbf16, #tpu.memory_space<vmem>>, %arg8: memref<1x128xf32, #tpu.memory_space<vmem>>, %arg9: memref<128x128xbf16, #tpu.memory_space<vmem>>, %arg10: memref<1x128xf32, #tpu.memory_space<vmem>>, %arg11: memref<128x128xbf16, #tpu.memory_space<vmem>>, %arg12: memref<1x128xf32, #tpu.memory_space<vmem>>, %arg13: memref<8x128xf32, #tpu.memory_space<vmem>>, %arg14: memref<8x128xf32, #tpu.memory_space<vmem>>) attributes {dimension_semantics = [#tpu.dimension_semantics<parallel>], iteration_bounds = array<i64: 1>, scalar_prefetch = 0 : i64, scratch_operands = 0 : i64, tpu.core_type = #tpu.core_type<tc>, window_params = [{transform_indices = @transform_0, window_bounds = array<i64: 8, 32>}, {transform_indices = @transform_1, window_bounds = array<i64: 1, 1>}, {pipeline_mode = #tpu.pipeline_mode<synchronous>, transform_indices = @transform_2, window_bounds = array<i64: 32, 128>}, {pipeline_mode = #tpu.pipeline_mode<synchronous>, transform_indices = @transform_3, window_bounds = array<i64: 1, 128>}, {pipeline_mode = #tpu.pipeline_mode<synchronous>, transform_indices = @transform_4, window_bounds = array<i64: 1, 128>}, {pipeline_mode = #tpu.pipeline_mode<synchronous>, transform_indices = @transform_5, window_bounds = array<i64: 1, 128>}, {pipeline_mode = #tpu.pipeline_mode<synchronous>, transform_indices = @transform_6, window_bounds = array<i64: 128, 128>}, {pipeline_mode = #tpu.pipeline_mode<synchronous>, transform_indices = @transform_7, window_bounds = array<i64: 1, 128>}, {pipeline_mode = #tpu.pipeline_mode<synchronous>, transform_indices = @transform_8, window_bounds = array<i64: 128, 128>}, {pipeline_mode = #tpu.pipeline_mode<synchronous>, transform_indices = @transform_9, window_bounds = array<i64: 1, 128>}, {pipeline_mode = #tpu.pipeline_mode<synchronous>, transform_indices = @transform_10, window_bounds = array<i64: 128, 128>}, {pipeline_mode = #tpu.pipeline_mode<synchronous>, transform_indices = @transform_11, window_bounds = array<i64: 1, 128>}, {transform_indices = @transform_12, window_bounds = array<i64: 8, 128>}, {transform_indices = @transform_13, window_bounds = array<i64: 8, 128>}]} {
    %c0 = arith.constant 0 : index
    %c0_0 = arith.constant 0 : index
    %0 = vector.load %arg1[%c0, %c0_0] : memref<8x32xf32, #tpu.memory_space<vmem>>, vector<8x32xf32>
    %1 = arith.truncf %0 : vector<8x32xf32> to vector<8x32xbf16>
    %c0_1 = arith.constant 0 : index
    %c0_2 = arith.constant 0 : index
    %2 = vector.load %arg3[%c0_1, %c0_2] : memref<32x128xbf16, #tpu.memory_space<vmem>>, vector<32x128xbf16>
    %cst = arith.constant dense<0.000000e+00> : vector<8x128xf32>
    %3 = tpu.matmul %1, %2, %cst {dimension_numbers = #tpu.dot_dimension_numbers<[1], [0], [0], [1], [0, 0, 1, 1], [], []>} : vector<8x32xbf16>, vector<32x128xbf16>, vector<8x128xf32> -> vector<8x128xf32>
    %c0_3 = arith.constant 0 : index
    %c0_4 = arith.constant 0 : index
    %4 = vector.load %arg4[%c0_3, %c0_4] : memref<1x128xf32, #tpu.memory_space<vmem>>, vector<1x128xf32>
    %5 = vector.broadcast %4 : vector<1x128xf32> to vector<8x128xf32>
    %6 = arith.addf %3, %5 : vector<8x128xf32>
    %7 = tpu.iota {dimensions = array<i32: 1>} : vector<1x128xi32>
    %c16_i32 = arith.constant 16 : i32
    %8 = vector.broadcast %c16_i32 : i32 to vector<1x128xi32>
    %9 = arith.cmpi slt, %7, %8 : vector<1x128xi32>
    %10 = arith.extui %9 : vector<1x128xi1> to vector<1x128xi32>
    %11 = arith.sitofp %10 : vector<1x128xi32> to vector<1x128xf32>
    %cst_5 = arith.constant dense<0.000000e+00> : vector<8xf32>
    %12 = vector.multi_reduction <add>, %6, %cst_5 [1] : vector<8x128xf32> to vector<8xf32>
    %13 = vector.shape_cast %12 : vector<8xf32> to vector<8x1xf32>
    %cst_6 = arith.constant 6.250000e-02 : f32
    %14 = vector.broadcast %cst_6 : f32 to vector<8x1xf32>
    %15 = arith.mulf %13, %14 : vector<8x1xf32>
    %16 = vector.broadcast %15 : vector<8x1xf32> to vector<8x128xf32>
    %17 = arith.subf %6, %16 : vector<8x128xf32>
    %18 = vector.broadcast %11 : vector<1x128xf32> to vector<8x128xf32>
    %19 = arith.mulf %17, %18 : vector<8x128xf32>
    %20 = arith.mulf %19, %19 : vector<8x128xf32>
    %cst_7 = arith.constant dense<0.000000e+00> : vector<8xf32>
    %21 = vector.multi_reduction <add>, %20, %cst_7 [1] : vector<8x128xf32> to vector<8xf32>
    %22 = vector.shape_cast %21 : vector<8xf32> to vector<8x1xf32>
    %cst_8 = arith.constant 6.250000e-02 : f32
    %23 = vector.broadcast %cst_8 : f32 to vector<8x1xf32>
    %24 = arith.mulf %22, %23 : vector<8x1xf32>
    %cst_9 = arith.constant 9.99999974E-6 : f32
    %25 = vector.broadcast %cst_9 : f32 to vector<8x1xf32>
    %26 = arith.addf %24, %25 : vector<8x1xf32>
    %27 = math.rsqrt %26 : vector<8x1xf32>
    %28 = vector.broadcast %27 : vector<8x1xf32> to vector<8x128xf32>
    %29 = arith.mulf %17, %28 : vector<8x128xf32>
    %c0_10 = arith.constant 0 : index
    %c0_11 = arith.constant 0 : index
    %30 = vector.load %arg5[%c0_10, %c0_11] : memref<1x128xf32, #tpu.memory_space<vmem>>, vector<1x128xf32>
    %31 = vector.broadcast %30 : vector<1x128xf32> to vector<8x128xf32>
    %32 = arith.mulf %29, %31 : vector<8x128xf32>
    %c0_12 = arith.constant 0 : index
    %c0_13 = arith.constant 0 : index
    %33 = vector.load %arg6[%c0_12, %c0_13] : memref<1x128xf32, #tpu.memory_space<vmem>>, vector<1x128xf32>
    %34 = vector.broadcast %33 : vector<1x128xf32> to vector<8x128xf32>
    %35 = arith.addf %32, %34 : vector<8x128xf32>
    %36 = math.tanh %35 : vector<8x128xf32>
    %37 = arith.truncf %36 : vector<8x128xf32> to vector<8x128xbf16>
    %c0_14 = arith.constant 0 : index
    %c0_15 = arith.constant 0 : index
    %38 = vector.load %arg7[%c0_14, %c0_15] : memref<128x128xbf16, #tpu.memory_space<vmem>>, vector<128x128xbf16>
    %cst_16 = arith.constant dense<0.000000e+00> : vector<8x128xf32>
    %39 = tpu.matmul %37, %38, %cst_16 {dimension_numbers = #tpu.dot_dimension_numbers<[1], [0], [0], [1], [0, 0, 1, 1], [], []>} : vector<8x128xbf16>, vector<128x128xbf16>, vector<8x128xf32> -> vector<8x128xf32>
    %c0_17 = arith.constant 0 : index
    %c0_18 = arith.constant 0 : index
    %40 = vector.load %arg8[%c0_17, %c0_18] : memref<1x128xf32, #tpu.memory_space<vmem>>, vector<1x128xf32>
    %41 = vector.broadcast %40 : vector<1x128xf32> to vector<8x128xf32>
    %42 = arith.addf %39, %41 : vector<8x128xf32>
    %cst_19 = arith.constant 0.000000e+00 : f32
    %43 = vector.broadcast %cst_19 : f32 to vector<8x128xf32>
    %44 = arith.maximumf %42, %43 : vector<8x128xf32>
    %45 = arith.truncf %44 : vector<8x128xf32> to vector<8x128xbf16>
    %c0_20 = arith.constant 0 : index
    %c0_21 = arith.constant 0 : index
    %46 = vector.load %arg9[%c0_20, %c0_21] : memref<128x128xbf16, #tpu.memory_space<vmem>>, vector<128x128xbf16>
    %cst_22 = arith.constant dense<0.000000e+00> : vector<8x128xf32>
    %47 = tpu.matmul %45, %46, %cst_22 {dimension_numbers = #tpu.dot_dimension_numbers<[1], [0], [0], [1], [0, 0, 1, 1], [], []>} : vector<8x128xbf16>, vector<128x128xbf16>, vector<8x128xf32> -> vector<8x128xf32>
    %c0_23 = arith.constant 0 : index
    %c0_24 = arith.constant 0 : index
    %48 = vector.load %arg10[%c0_23, %c0_24] : memref<1x128xf32, #tpu.memory_space<vmem>>, vector<1x128xf32>
    %49 = vector.broadcast %48 : vector<1x128xf32> to vector<8x128xf32>
    %50 = arith.addf %47, %49 : vector<8x128xf32>
    %cst_25 = arith.constant 0.000000e+00 : f32
    %51 = vector.broadcast %cst_25 : f32 to vector<8x128xf32>
    %52 = arith.maximumf %50, %51 : vector<8x128xf32>
    %53 = arith.truncf %52 : vector<8x128xf32> to vector<8x128xbf16>
    %c0_26 = arith.constant 0 : index
    %c0_27 = arith.constant 0 : index
    %54 = vector.load %arg11[%c0_26, %c0_27] : memref<128x128xbf16, #tpu.memory_space<vmem>>, vector<128x128xbf16>
    %cst_28 = arith.constant dense<0.000000e+00> : vector<8x128xf32>
    %55 = tpu.matmul %53, %54, %cst_28 {dimension_numbers = #tpu.dot_dimension_numbers<[1], [0], [0], [1], [0, 0, 1, 1], [], []>} : vector<8x128xbf16>, vector<128x128xbf16>, vector<8x128xf32> -> vector<8x128xf32>
    %c0_29 = arith.constant 0 : index
    %c0_30 = arith.constant 0 : index
    %56 = vector.load %arg12[%c0_29, %c0_30] : memref<1x128xf32, #tpu.memory_space<vmem>>, vector<1x128xf32>
    %57 = vector.broadcast %56 : vector<1x128xf32> to vector<8x128xf32>
    %58 = arith.addf %55, %57 : vector<8x128xf32>
    %59 = math.tanh %58 : vector<8x128xf32>
    %c0_31 = arith.constant 0 : index
    %c0_32 = arith.constant 0 : index
    %60 = vector.load %arg13[%c0_31, %c0_32] : memref<8x128xf32, #tpu.memory_space<vmem>>, vector<8x128xf32>
    tpu.vector_store %arg13[%c0_31, %c0_32], %59 {strides = array<i32>} : memref<8x128xf32, #tpu.memory_space<vmem>>, vector<8x128xf32>,
    %c0_33 = arith.constant 0 : index
    %c0_34 = arith.constant 0 : index
    %61 = memref.load %arg2[%c0_33, %c0_34] : memref<1x1xf32, #tpu.memory_space<smem>>
    %62 = vector.broadcast %61 : f32 to vector<8x128xf32>
    %c0_35 = arith.constant 0 : index
    %c0_36 = arith.constant 0 : index
    %63 = vector.load %arg14[%c0_35, %c0_36] : memref<8x128xf32, #tpu.memory_space<vmem>>, vector<8x128xf32>
    tpu.vector_store %arg14[%c0_35, %c0_36], %62 {strides = array<i32>} : memref<8x128xf32, #tpu.memory_space<vmem>>, vector<8x128xf32>,
    return
  }
  func.func @transform_0(%arg0: i32) -> (i32, i32) {
    %c0_i32 = arith.constant 0 : i32
    %c0_i32_0 = arith.constant 0 : i32
    return %arg0, %c0_i32 : i32, i32
  }
  func.func @transform_1(%arg0: i32) -> (i32, i32) {
    %c0_i32 = arith.constant 0 : i32
    %c0_i32_0 = arith.constant 0 : i32
    %c0_i32_1 = arith.constant 0 : i32
    return %c0_i32, %c0_i32_0 : i32, i32
  }
  func.func @transform_2(%arg0: i32) -> (i32, i32) {
    %c0_i32 = arith.constant 0 : i32
    %c0_i32_0 = arith.constant 0 : i32
    %c0_i32_1 = arith.constant 0 : i32
    return %c0_i32, %c0_i32_0 : i32, i32
  }
  func.func @transform_3(%arg0: i32) -> (i32, i32) {
    %c0_i32 = arith.constant 0 : i32
    %c0_i32_0 = arith.constant 0 : i32
    %c0_i32_1 = arith.constant 0 : i32
    return %c0_i32, %c0_i32_0 : i32, i32
  }
  func.func @transform_4(%arg0: i32) -> (i32, i32) {
    %c0_i32 = arith.constant 0 : i32
    %c0_i32_0 = arith.constant 0 : i32
    %c0_i32_1 = arith.constant 0 : i32
    return %c0_i32, %c0_i32_0 : i32, i32
  }
  func.func @transform_5(%arg0: i32) -> (i32, i32) {
    %c0_i32 = arith.constant 0 : i32
    %c0_i32_0 = arith.constant 0 : i32
    %c0_i32_1 = arith.constant 0 : i32
    return %c0_i32, %c0_i32_0 : i32, i32
  }
  func.func @transform_6(%arg0: i32) -> (i32, i32) {
    %c0_i32 = arith.constant 0 : i32
    %c0_i32_0 = arith.constant 0 : i32
    %c0_i32_1 = arith.constant 0 : i32
    return %c0_i32, %c0_i32_0 : i32, i32
  }
  func.func @transform_7(%arg0: i32) -> (i32, i32) {
    %c0_i32 = arith.constant 0 : i32
    %c0_i32_0 = arith.constant 0 : i32
    %c0_i32_1 = arith.constant 0 : i32
    return %c0_i32, %c0_i32_0 : i32, i32
  }
  func.func @transform_8(%arg0: i32) -> (i32, i32) {
    %c0_i32 = arith.constant 0 : i32
    %c0_i32_0 = arith.constant 0 : i32
    %c0_i32_1 = arith.constant 0 : i32
    return %c0_i32, %c0_i32_0 : i32, i32
  }
  func.func @transform_9(%arg0: i32) -> (i32, i32) {
    %c0_i32 = arith.constant 0 : i32
    %c0_i32_0 = arith.constant 0 : i32
    %c0_i32_1 = arith.constant 0 : i32
    return %c0_i32, %c0_i32_0 : i32, i32
  }
  func.func @transform_10(%arg0: i32) -> (i32, i32) {
    %c0_i32 = arith.constant 0 : i32
    %c0_i32_0 = arith.constant 0 : i32
    %c0_i32_1 = arith.constant 0 : i32
    return %c0_i32, %c0_i32_0 : i32, i32
  }
  func.func @transform_11(%arg0: i32) -> (i32, i32) {
    %c0_i32 = arith.constant 0 : i32
    %c0_i32_0 = arith.constant 0 : i32
    %c0_i32_1 = arith.constant 0 : i32
    return %c0_i32, %c0_i32_0 : i32, i32
  }
  func.func @transform_12(%arg0: i32) -> (i32, i32) {
    %c0_i32 = arith.constant 0 : i32
    %c0_i32_0 = arith.constant 0 : i32
    return %arg0, %c0_i32 : i32, i32
  }
  func.func @transform_13(%arg0: i32) -> (i32, i32) {
    %c0_i32 = arith.constant 0 : i32
    %c0_i32_0 = arith.constant 0 : i32
    return %arg0, %c0_i32 : i32, i32
  }
}

</mosaic_0001>

<llo_original>
// kernel: tpu_custom_call.1
$region0: #{tpu_custom_call.1}
  #allocation0 [shape = 'u32[]', space=smem, size = 0x4, offset = 0x4, fixed_abs, tag = 'smem constant byte address 0x4 - core index']
  #allocation1 [shape = 'u32[72,128]{1,0:T(1,128)}', space=vmem, size = 0x9000, scoped, tag = 'internal scratch']
  #allocation2 [shape = 'f32[1,1]{1,0:T(1,128)S(6)}', space=smem, size = 0x200, scoped, tag = 'scoped memory for tpu_custom_call.1']
  %s0 = inlined_call_operand.hbm [shape: f32[8,32], index: 0, kind: input, shape index: {}]
  %s1 = inlined_call_operand.<no memory space> [shape: f32[1,1], index: 1, kind: input, shape index: {}]
  %s2 = inlined_call_operand.hbm [shape: bf16[32,128], index: 2, kind: input, shape index: {}]
  %s3 = inlined_call_operand.vmem [shape: f32[1,128], index: 3, kind: input, shape index: {}]
  %s4 = inlined_call_operand.vmem [shape: f32[1,128], index: 4, kind: input, shape index: {}]
  %s5 = inlined_call_operand.vmem [shape: f32[1,128], index: 5, kind: input, shape index: {}]
  %s6 = inlined_call_operand.hbm [shape: bf16[128,128], index: 6, kind: input, shape index: {}]
  %s7 = inlined_call_operand.vmem [shape: f32[1,128], index: 7, kind: input, shape index: {}]
  %s8 = inlined_call_operand.hbm [shape: bf16[128,128], index: 8, kind: input, shape index: {}]
  %s9 = inlined_call_operand.vmem [shape: f32[1,128], index: 9, kind: input, shape index: {}]
  %s10 = inlined_call_operand.hbm [shape: bf16[128,128], index: 10, kind: input, shape index: {}]
  %s11 = inlined_call_operand.vmem [shape: f32[1,128], index: 11, kind: input, shape index: {}]
  %s12 = inlined_call_operand.hbm [shape: f32[8,128], index: 12, kind: output, shape index: {0}]
  %s13 = inlined_call_operand.hbm [shape: f32[8,128], index: 13, kind: output, shape index: {1}]
  %14 = xla_tuple %s12, %s13
  %s15 = sld [smem:[#allocation0]]
  $region86: #{tpu_custom_call.1} parent=0
    _
  %s17 = ssub.s32 1, %s15
  %s18 = scalar_select 0, %s17, %s15
  %19 = sst [smem:[#allocation2]] %s1
  $region1: #{tpu_custom_call.1} parent=0
    #allocation3 [shape = 'u8[4096]{0}', space=vmem, size = 0x1000, scoped, tag = 'input window, operand 0, single buffered']
    #allocation4 [shape = 's32[1]{0}', space=sflag, size = 0x4, scoped, tag = 'scoped memory for tpu_custom_call.1']
    #allocation5 [shape = 's32[1]{0}', space=sflag, size = 0x4, scoped, tag = 'scoped memory for tpu_custom_call.1']
    #allocation6 [shape = 'u8[8192]{0}', space=vmem, size = 0x2000, scoped, tag = 'input window, operand 2, single buffered']
    #allocation7 [shape = 's32[1]{0}', space=sflag, size = 0x4, scoped, tag = 'scoped memory for tpu_custom_call.1']
    #allocation8 [shape = 'u8[32768]{0}', space=vmem, size = 0x8000, scoped, tag = 'input window, operand 6, single buffered']
    #allocation9 [shape = 'u8[32768]{0}', space=vmem, size = 0x8000, scoped, tag = 'input window, operand 8, single buffered']
    #allocation10 [shape = 's32[1]{0}', space=sflag, size = 0x4, scoped, tag = 'scoped memory for tpu_custom_call.1']
    #allocation11 [shape = 'u8[32768]{0}', space=vmem, size = 0x8000, scoped, tag = 'input window, operand 10, single buffered']
    #allocation12 [shape = 'u8[4096]{0}', space=vmem, size = 0x1000, scoped, tag = 'output window, operand 0, single buffered']
    #allocation13 [shape = 'u8[4096]{0}', space=vmem, size = 0x1000, scoped, tag = 'output window, operand 1, single buffered']
    #allocation14 [shape = 's32[1]{0}', space=sflag, size = 0x4, scoped, tag = 'scoped memory for tpu_custom_call.1']
    %20 = vsyncpa [#allocation4], 0
    %21 = vsyncpa [#allocation7], 0
    %22 = vsyncpa [#allocation10], 0
    %23 = vsyncpa [#allocation5], 0
    %24 = vsyncpa [#allocation14], 0
    // Predicated region
    $region2: #{tpu_custom_call.1} parent=1 // pred_check
      _
    $region3: #{tpu_custom_call.1} parent=1 // pred_check_branch
      %26 = sbr.rel (0) target = $region5
    $region4: #{tpu_custom_call.1} parent=1 // pred_region
      %28 = vsyncadd [#allocation4], 0
      %s30 = sshll.u32 %s0, 4
      %s31 = int_to_ptr.hbm [resolvable:$true] %s30
      %s32 = sshll.u32 [#allocation3], 4
      %s33 = int_to_ptr.vmem [resolvable:$true] %s32
      %35 = dma.hbm_to_vmem [thread:$0]  %s31, 128, %s33, [#allocation4]
    $region5: #{tpu_custom_call.1} parent=1 // pred_fallthru
      _
    // Predicated region
    $region6: #{tpu_custom_call.1} parent=1 // pred_check
      _
    $region7: #{tpu_custom_call.1} parent=1 // pred_check_branch
      %37 = sbr.rel (0) target = $region9
    $region8: #{tpu_custom_call.1} parent=1 // pred_region
      _
    $region9: #{tpu_custom_call.1} parent=1 // pred_fallthru
      _
    // Predicated region
    $region10: #{tpu_custom_call.1} parent=1 // pred_check
      _
    $region11: #{tpu_custom_call.1} parent=1 // pred_check_branch
      %39 = sbr.rel (0) target = $region13
    $region12: #{tpu_custom_call.1} parent=1 // pred_region
      %41 = vsyncadd [#allocation7], 0
      %s42 = sshll.u32 %s2, 4
      %s43 = int_to_ptr.hbm [resolvable:$true] %s42
      %s44 = sshll.u32 [#allocation6], 4
      %s45 = int_to_ptr.vmem [resolvable:$true] %s44
      %50 = dma.hbm_to_vmem [thread:$0]  %s43, 256, %s45, [#allocation7], 64, 64, 4
    $region13: #{tpu_custom_call.1} parent=1 // pred_fallthru
      _
    // Predicated region
    $region14: #{tpu_custom_call.1} parent=1 // pred_check
      _
    $region15: #{tpu_custom_call.1} parent=1 // pred_check_branch
      %52 = sbr.rel (0) target = $region17
    $region16: #{tpu_custom_call.1} parent=1 // pred_region
      _
    $region17: #{tpu_custom_call.1} parent=1 // pred_fallthru
      _
    // Predicated region
    $region18: #{tpu_custom_call.1} parent=1 // pred_check
      _
    $region19: #{tpu_custom_call.1} parent=1 // pred_check_branch
      %54 = sbr.rel (0) target = $region21
    $region20: #{tpu_custom_call.1} parent=1 // pred_region
      _
    $region21: #{tpu_custom_call.1} parent=1 // pred_fallthru
      _
    // Predicated region
    $region22: #{tpu_custom_call.1} parent=1 // pred_check
      _
    $region23: #{tpu_custom_call.1} parent=1 // pred_check_branch
      %56 = sbr.rel (0) target = $region25
    $region24: #{tpu_custom_call.1} parent=1 // pred_region
      _
    $region25: #{tpu_custom_call.1} parent=1 // pred_fallthru
      _
    // Predicated region
    $region26: #{tpu_custom_call.1} parent=1 // pred_check
      _
    $region27: #{tpu_custom_call.1} parent=1 // pred_check_branch
      %58 = sbr.rel (0) target = $region29
    $region28: #{tpu_custom_call.1} parent=1 // pred_region
      %60 = vsyncadd [#allocation7], 0
      %s61 = sshll.u32 %s6, 4
      %s62 = int_to_ptr.hbm [resolvable:$true] %s61
      %s63 = sshll.u32 [#allocation8], 4
      %s64 = int_to_ptr.vmem [resolvable:$true] %s63
      %69 = dma.hbm_to_vmem [thread:$0]  %s62, 1024, %s64, [#allocation7], 64, 64, 4
    $region29: #{tpu_custom_call.1} parent=1 // pred_fallthru
      _
    // Predicated region
    $region30: #{tpu_custom_call.1} parent=1 // pred_check
      _
    $region31: #{tpu_custom_call.1} parent=1 // pred_check_branch
      %71 = sbr.rel (0) target = $region33
    $region32: #{tpu_custom_call.1} parent=1 // pred_region
      _
    $region33: #{tpu_custom_call.1} parent=1 // pred_fallthru
      _
    // Predicated region
    $region34: #{tpu_custom_call.1} parent=1 // pred_check
      _
    $region35: #{tpu_custom_call.1} parent=1 // pred_check_branch
      %73 = sbr.rel (0) target = $region37
    $region36: #{tpu_custom_call.1} parent=1 // pred_region
      %75 = vsyncadd [#allocation10], 0
      %s76 = sshll.u32 %s8, 4
      %s77 = int_to_ptr.hbm [resolvable:$true] %s76
      %s78 = sshll.u32 [#allocation9], 4
      %s79 = int_to_ptr.vmem [resolvable:$true] %s78
      %84 = dma.hbm_to_vmem [thread:$0]  %s77, 1024, %s79, [#allocation10], 64, 64, 4
    $region37: #{tpu_custom_call.1} parent=1 // pred_fallthru
      _
    // Predicated region
    $region38: #{tpu_custom_call.1} parent=1 // pred_check
      _
    $region39: #{tpu_custom_call.1} parent=1 // pred_check_branch
      %86 = sbr.rel (0) target = $region41
    $region40: #{tpu_custom_call.1} parent=1 // pred_region
      _
    $region41: #{tpu_custom_call.1} parent=1 // pred_fallthru
      _
    // Predicated region
    $region42: #{tpu_custom_call.1} parent=1 // pred_check
      _
    $region43: #{tpu_custom_call.1} parent=1 // pred_check_branch
      %88 = sbr.rel (0) target = $region45
    $region44: #{tpu_custom_call.1} parent=1 // pred_region
      %90 = vsyncadd [#allocation10], 0
      %s91 = sshll.u32 %s10, 4
      %s92 = int_to_ptr.hbm [resolvable:$true] %s91
      %s93 = sshll.u32 [#allocation11], 4
      %s94 = int_to_ptr.vmem [resolvable:$true] %s93
      %99 = dma.hbm_to_vmem [thread:$0]  %s92, 1024, %s94, [#allocation10], 64, 64, 4
    $region45: #{tpu_custom_call.1} parent=1 // pred_fallthru
      _
    // Predicated region
    $region46: #{tpu_custom_call.1} parent=1 // pred_check
      _
    $region47: #{tpu_custom_call.1} parent=1 // pred_check_branch
      %101 = sbr.rel (0) target = $region49
    $region48: #{tpu_custom_call.1} parent=1 // pred_region
      _
    $region49: #{tpu_custom_call.1} parent=1 // pred_fallthru
      _
    // Predicated region
    $region50: #{tpu_custom_call.1} parent=1 // pred_check
      _
    $region51: #{tpu_custom_call.1} parent=1 // pred_check_branch
      %103 = sbr.rel (0) target = $region53
    $region52: #{tpu_custom_call.1} parent=1 // pred_region
      %105 = dma.done [#allocation4], 128
    $region53: #{tpu_custom_call.1} parent=1 // pred_fallthru
      _
    // Predicated region
    $region54: #{tpu_custom_call.1} parent=1 // pred_check
      _
    $region55: #{tpu_custom_call.1} parent=1 // pred_check_branch
      %107 = sbr.rel (0) target = $region57
    $region56: #{tpu_custom_call.1} parent=1 // pred_region
      %109 = dma.done [#allocation7], 256
    $region57: #{tpu_custom_call.1} parent=1 // pred_fallthru
      _
    // Predicated region
    $region58: #{tpu_custom_call.1} parent=1 // pred_check
      _
    $region59: #{tpu_custom_call.1} parent=1 // pred_check_branch
      %111 = sbr.rel (0) target = $region61
    $region60: #{tpu_custom_call.1} parent=1 // pred_region
      %113 = dma.done [#allocation7], 1024
    $region61: #{tpu_custom_call.1} parent=1 // pred_fallthru
      _
    // Predicated region
    $region62: #{tpu_custom_call.1} parent=1 // pred_check
      _
    $region63: #{tpu_custom_call.1} parent=1 // pred_check_branch
      %115 = sbr.rel (0) target = $region65
    $region64: #{tpu_custom_call.1} parent=1 // pred_region
      %117 = dma.done [#allocation10], 1024
    $region65: #{tpu_custom_call.1} parent=1 // pred_fallthru
      _
    // Predicated region
    $region66: #{tpu_custom_call.1} parent=1 // pred_check
      _
    $region67: #{tpu_custom_call.1} parent=1 // pred_check_branch
      %119 = sbr.rel (0) target = $region69
    $region68: #{tpu_custom_call.1} parent=1 // pred_region
      %121 = dma.done [#allocation10], 1024
    $region69: #{tpu_custom_call.1} parent=1 // pred_fallthru
      _
    %v123 = vld [vmem:[#allocation3] sm:$0xff]
    %v124 = vpack.c.bf16 %v123, %v123
    %v125 = vld [vmem:[#allocation6] sm:$0xf]
    %v126 = vld [vmem:[#allocation6 + $0x4] sm:$0xf]
    %v127 = vld [vmem:[#allocation6 + $0x8] sm:$0xf]
    %v128 = vld [vmem:[#allocation6 + $0xc] sm:$0xf]
    %v129 = vld [vmem:[%s3] sm:$0x1]
    %v131 = vperm.slane %v129, 0
    %v137 = vunpack.c.l.b16 %v125
    %v138 = vunpack.c.l.b16 %v126
    %v139 = vunpack.c.l.b16 %v127
    %v140 = vunpack.c.l.b16 %v128
    %v141 = vpack.c.b16 %v138, %v137
    %v142 = vpack.c.b16 %v140, %v139
    %vm145 = vcmask 261120
    %v147 = vsel %vm145, %v124, 0
    %149 = vmatpush.bf16.msra.mxu0 0
    %150 = vmatpush.bf16.msra.mxu0 0
    %151 = vmatpush.bf16.msra.mxu0 0
    %152 = vmatpush.bf16.msra.mxu0 0
    %153 = vmatpush.bf16.msra.mxu0 0
    %154 = vmatpush.bf16.msra.mxu0 0
    %155 = vmatpush.bf16.msra.mxu0 %v142
    %156 = vmatpush.bf16.msra.mxu0 %v141
    %157 = vmatmul.bf16.gmra.mxu0 %v147
    %v158 = vpop.f32.mrf.mxu0
    %v159 = vadd.f32 %v131, %v158
    %v160 = vpop.f32.mrf.mxu0
    %161 = vdwg.mxu0
    %v162 = vlaneseq
    %v163 = vand.u32 %v162, 127
    %vm164 = vcmp.lt.s32.totalorder %v163, 16
    %v165 = vsel %vm164, 1, 0
    %v166 = vcvt.s32.f32 %v165
    %167 = vadd.xlane.f32.xlu0 %v159
    %v168 = vpop.xlane.xlu0 %167
    %v169 = vmul.f32 %v168, 0.0625
    %v170 = vsub.f32 %v159, %v169
    %v171 = vmul.f32 %v170, %v166
    %v172 = vmul.f32 %v171, %v171
    %173 = vadd.xlane.f32.xlu0 %v172
    %v174 = vpop.xlane.xlu0 %173
    %v175 = vmul.f32 %v174, 0.0625
    %v176 = vadd.f32 %v175, 1e-05
    %v177 = vrsqrt.pop %v176
    %v178 = vmul.f32 %v177, %v176
    %v179 = vmul.f32 %v178, %v177
    %v180 = vmul.f32 0.5, %v179
    %v181 = vsub.f32 1.5, %v180
    %v182 = vmul.f32 %v177, %v181
    %vm183 = vweird.f32 %v176
    %vm184 = vweird.f32 %v177
    %vm185 = vmor %vm183, %vm184
    %v186 = vsel %vm185, %v177, %v182
    %v187 = vmul.f32 %v170, %v186
    %v188 = vld [vmem:[%s4] sm:$0x1]
    %v190 = vperm.slane %v188, 0
    %v192 = vmul.f32 %v187, %v190
    %v193 = vld [vmem:[%s5] sm:$0x1]
    %v195 = vperm.slane %v193, 0
    %v197 = vadd.f32 %v192, %v195
    %v198 = vtanh.pop %v197
    %v199 = vpack.c.bf16 %v198, %v198
    %v200 = vld [vmem:[#allocation8] sm:$0xf]
    %v201 = vld [vmem:[#allocation8 + $0x4] sm:$0xf]
    %v202 = vld [vmem:[#allocation8 + $0x8] sm:$0xf]
    %v203 = vld [vmem:[#allocation8 + $0xc] sm:$0xf]
    %v204 = vld [vmem:[#allocation8 + $0x10] sm:$0xf]
    %v205 = vld [vmem:[#allocation8 + $0x14] sm:$0xf]
    %v206 = vld [vmem:[#allocation8 + $0x18] sm:$0xf]
    %v207 = vld [vmem:[#allocation8 + $0x1c] sm:$0xf]
    %v208 = vld [vmem:[#allocation8 + $0x20] sm:$0xf]
    %v209 = vld [vmem:[#allocation8 + $0x24] sm:$0xf]
    %v210 = vld [vmem:[#allocation8 + $0x28] sm:$0xf]
    %v211 = vld [vmem:[#allocation8 + $0x2c] sm:$0xf]
    %v212 = vld [vmem:[#allocation8 + $0x30] sm:$0xf]
    %v213 = vld [vmem:[#allocation8 + $0x34] sm:$0xf]
    %v214 = vld [vmem:[#allocation8 + $0x38] sm:$0xf]
    %v215 = vld [vmem:[#allocation8 + $0x3c] sm:$0xf]
    %v216 = vld [vmem:[%s7] sm:$0x1]
    %v218 = vperm.slane %v216, 0
    %v236 = vunpack.c.l.b16 %v200
    %v237 = vunpack.c.l.b16 %v201
    %v238 = vunpack.c.l.b16 %v202
    %v239 = vunpack.c.l.b16 %v203
    %v240 = vunpack.c.l.b16 %v204
    %v241 = vunpack.c.l.b16 %v205
    %v242 = vunpack.c.l.b16 %v206
    %v243 = vunpack.c.l.b16 %v207
    %v244 = vunpack.c.l.b16 %v208
    %v245 = vunpack.c.l.b16 %v209
    %v246 = vunpack.c.l.b16 %v210
    %v247 = vunpack.c.l.b16 %v211
    %v248 = vunpack.c.l.b16 %v212
    %v249 = vunpack.c.l.b16 %v213
    %v250 = vunpack.c.l.b16 %v214
    %v251 = vunpack.c.l.b16 %v215
    %v252 = vpack.c.b16 %v237, %v236
    %v253 = vpack.c.b16 %v239, %v238
    %v254 = vpack.c.b16 %v241, %v240
    %v255 = vpack.c.b16 %v243, %v242
    %v256 = vpack.c.b16 %v245, %v244
    %v257 = vpack.c.b16 %v247, %v246
    %v258 = vpack.c.b16 %v249, %v248
    %v259 = vpack.c.b16 %v251, %v250
    %268 = vmatpush.bf16.msra.mxu0 %v259
    %269 = vmatpush.bf16.msra.mxu0 %v258
    %270 = vmatpush.bf16.msra.mxu0 %v257
    %271 = vmatpush.bf16.msra.mxu0 %v256
    %272 = vmatpush.bf16.msra.mxu0 %v255
    %273 = vmatpush.bf16.msra.mxu0 %v254
    %274 = vmatpush.bf16.msra.mxu0 %v253
    %275 = vmatpush.bf16.msra.mxu0 %v252
    %276 = vmatmul.bf16.gmra.mxu0 %v199
    %v277 = vpop.f32.mrf.mxu0
    %v278 = vadd.f32 %v218, %v277
    %v279 = vpop.f32.mrf.mxu0
    %280 = vdwg.mxu0
    %v281 = vmax.f32 %v278, 0.0
    %v282 = vpack.c.bf16 %v281, %v281
    %v283 = vld [vmem:[#allocation9] sm:$0xf]
    %v284 = vld [vmem:[#allocation9 + $0x4] sm:$0xf]
    %v285 = vld [vmem:[#allocation9 + $0x8] sm:$0xf]
    %v286 = vld [vmem:[#allocation9 + $0xc] sm:$0xf]
    %v287 = vld [vmem:[#allocation9 + $0x10] sm:$0xf]
    %v288 = vld [vmem:[#allocation9 + $0x14] sm:$0xf]
    %v289 = vld [vmem:[#allocation9 + $0x18] sm:$0xf]
    %v290 = vld [vmem:[#allocation9 + $0x1c] sm:$0xf]
    %v291 = vld [vmem:[#allocation9 + $0x20] sm:$0xf]
    %v292 = vld [vmem:[#allocation9 + $0x24] sm:$0xf]
    %v293 = vld [vmem:[#allocation9 + $0x28] sm:$0xf]
    %v294 = vld [vmem:[#allocation9 + $0x2c] sm:$0xf]
    %v295 = vld [vmem:[#allocation9 + $0x30] sm:$0xf]
    %v296 = vld [vmem:[#allocation9 + $0x34] sm:$0xf]
    %v297 = vld [vmem:[#allocation9 + $0x38] sm:$0xf]
    %v298 = vld [vmem:[#allocation9 + $0x3c] sm:$0xf]
    %v299 = vld [vmem:[%s9] sm:$0x1]
    %v301 = vperm.slane %v299, 0
    %v319 = vunpack.c.l.b16 %v283
    %v320 = vunpack.c.l.b16 %v284
    %v321 = vunpack.c.l.b16 %v285
    %v322 = vunpack.c.l.b16 %v286
    %v323 = vunpack.c.l.b16 %v287
    %v324 = vunpack.c.l.b16 %v288
    %v325 = vunpack.c.l.b16 %v289
    %v326 = vunpack.c.l.b16 %v290
    %v327 = vunpack.c.l.b16 %v291
    %v328 = vunpack.c.l.b16 %v292
    %v329 = vunpack.c.l.b16 %v293
    %v330 = vunpack.c.l.b16 %v294
    %v331 = vunpack.c.l.b16 %v295
    %v332 = vunpack.c.l.b16 %v296
    %v333 = vunpack.c.l.b16 %v297
    %v334 = vunpack.c.l.b16 %v298
    %v335 = vpack.c.b16 %v320, %v319
    %v336 = vpack.c.b16 %v322, %v321
    %v337 = vpack.c.b16 %v324, %v323
    %v338 = vpack.c.b16 %v326, %v325
    %v339 = vpack.c.b16 %v328, %v327
    %v340 = vpack.c.b16 %v330, %v329
    %v341 = vpack.c.b16 %v332, %v331
    %v342 = vpack.c.b16 %v334, %v333
    %351 = vmatpush.bf16.msra.mxu0 %v342
    %352 = vmatpush.bf16.msra.mxu0 %v341
    %353 = vmatpush.bf16.msra.mxu0 %v340
    %354 = vmatpush.bf16.msra.mxu0 %v339
    %355 = vmatpush.bf16.msra.mxu0 %v338
    %356 = vmatpush.bf16.msra.mxu0 %v337
    %357 = vmatpush.bf16.msra.mxu0 %v336
    %358 = vmatpush.bf16.msra.mxu0 %v335
    %359 = vmatmul.bf16.gmra.mxu0 %v282
    %v360 = vpop.f32.mrf.mxu0
    %v361 = vadd.f32 %v301, %v360
    %v362 = vpop.f32.mrf.mxu0
    %363 = vdwg.mxu0
    %v364 = vmax.f32 %v361, 0.0
    %v365 = vpack.c.bf16 %v364, %v364
    %v366 = vld [vmem:[#allocation11] sm:$0xf]
    %v367 = vld [vmem:[#allocation11 + $0x4] sm:$0xf]
    %v368 = vld [vmem:[#allocation11 + $0x8] sm:$0xf]
    %v369 = vld [vmem:[#allocation11 + $0xc] sm:$0xf]
    %v370 = vld [vmem:[#allocation11 + $0x10] sm:$0xf]
    %v371 = vld [vmem:[#allocation11 + $0x14] sm:$0xf]
    %v372 = vld [vmem:[#allocation11 + $0x18] sm:$0xf]
    %v373 = vld [vmem:[#allocation11 + $0x1c] sm:$0xf]
    %v374 = vld [vmem:[#allocation11 + $0x20] sm:$0xf]
    %v375 = vld [vmem:[#allocation11 + $0x24] sm:$0xf]
    %v376 = vld [vmem:[#allocation11 + $0x28] sm:$0xf]
    %v377 = vld [vmem:[#allocation11 + $0x2c] sm:$0xf]
    %v378 = vld [vmem:[#allocation11 + $0x30] sm:$0xf]
    %v379 = vld [vmem:[#allocation11 + $0x34] sm:$0xf]
    %v380 = vld [vmem:[#allocation11 + $0x38] sm:$0xf]
    %v381 = vld [vmem:[#allocation11 + $0x3c] sm:$0xf]
    %v382 = vld [vmem:[%s11] sm:$0x1]
    %v384 = vperm.slane %v382, 0
    %v402 = vunpack.c.l.b16 %v366
    %v403 = vunpack.c.l.b16 %v367
    %v404 = vunpack.c.l.b16 %v368
    %v405 = vunpack.c.l.b16 %v369
    %v406 = vunpack.c.l.b16 %v370
    %v407 = vunpack.c.l.b16 %v371
    %v408 = vunpack.c.l.b16 %v372
    %v409 = vunpack.c.l.b16 %v373
    %v410 = vunpack.c.l.b16 %v374
    %v411 = vunpack.c.l.b16 %v375
    %v412 = vunpack.c.l.b16 %v376
    %v413 = vunpack.c.l.b16 %v377
    %v414 = vunpack.c.l.b16 %v378
    %v415 = vunpack.c.l.b16 %v379
    %v416 = vunpack.c.l.b16 %v380
    %v417 = vunpack.c.l.b16 %v381
    %v418 = vpack.c.b16 %v403, %v402
    %v419 = vpack.c.b16 %v405, %v404
    %v420 = vpack.c.b16 %v407, %v406
    %v421 = vpack.c.b16 %v409, %v408
    %v422 = vpack.c.b16 %v411, %v410
    %v423 = vpack.c.b16 %v413, %v412
    %v424 = vpack.c.b16 %v415, %v414
    %v425 = vpack.c.b16 %v417, %v416
    %434 = vmatpush.bf16.msra.mxu0 %v425
    %435 = vmatpush.bf16.msra.mxu0 %v424
    %436 = vmatpush.bf16.msra.mxu0 %v423
    %437 = vmatpush.bf16.msra.mxu0 %v422
    %438 = vmatpush.bf16.msra.mxu0 %v421
    %439 = vmatpush.bf16.msra.mxu0 %v420
    %440 = vmatpush.bf16.msra.mxu0 %v419
    %441 = vmatpush.bf16.msra.mxu0 %v418
    %442 = vmatmul.bf16.gmra.mxu0 %v365
    %v443 = vpop.f32.mrf.mxu0
    %v444 = vadd.f32 %v384, %v443
    %v445 = vpop.f32.mrf.mxu0
    %446 = vdwg.mxu0
    %v447 = vtanh.pop %v444
    %448 = vst [vmem:[#allocation12] sm:$0xff] %v447
    %s449 = sld [smem:[#allocation2]]
    %v450 = vstv %s449
    %451 = vst [vmem:[#allocation13] sm:$0xff] %v450
    // Predicated region
    $region70: #{tpu_custom_call.1} parent=1 // pred_check
      _
    $region71: #{tpu_custom_call.1} parent=1 // pred_check_branch
      %453 = sbr.rel (0) target = $region73
    $region72: #{tpu_custom_call.1} parent=1 // pred_region
      %455 = vsyncadd [#allocation5], 0
      %s457 = sshll.u32 [#allocation12], 4
      %s458 = int_to_ptr.vmem [resolvable:$true] %s457
      %s459 = sshll.u32 %s12, 4
      %s460 = int_to_ptr.hbm [resolvable:$true] %s459
      %462 = dma.vmem_to_hbm [thread:$0]  %s458, 128, %s460, [#allocation5]
    $region73: #{tpu_custom_call.1} parent=1 // pred_fallthru
      _
    // Predicated region
    $region74: #{tpu_custom_call.1} parent=1 // pred_check
      _
    $region75: #{tpu_custom_call.1} parent=1 // pred_check_branch
      %464 = sbr.rel (0) target = $region77
    $region76: #{tpu_custom_call.1} parent=1 // pred_region
      %466 = vsyncadd [#allocation14], 0
      %s468 = sshll.u32 [#allocation13], 4
      %s469 = int_to_ptr.vmem [resolvable:$true] %s468
      %s470 = sshll.u32 %s13, 4
      %s471 = int_to_ptr.hbm [resolvable:$true] %s470
      %473 = dma.vmem_to_hbm [thread:$0]  %s469, 128, %s471, [#allocation14]
    $region77: #{tpu_custom_call.1} parent=1 // pred_fallthru
      _
    // Predicated region
    $region78: #{tpu_custom_call.1} parent=1 // pred_check
      _
    $region79: #{tpu_custom_call.1} parent=1 // pred_check_branch
      %475 = sbr.rel (0) target = $region81
    $region80: #{tpu_custom_call.1} parent=1 // pred_region
      %477 = dma.done [#allocation5], 128
    $region81: #{tpu_custom_call.1} parent=1 // pred_fallthru
      _
    // Predicated region
    $region82: #{tpu_custom_call.1} parent=1 // pred_check
      _
    $region83: #{tpu_custom_call.1} parent=1 // pred_check_branch
      %479 = sbr.rel (0) target = $region85
    $region84: #{tpu_custom_call.1} parent=1 // pred_region
      %481 = dma.done [#allocation14], 128
    $region85: #{tpu_custom_call.1} parent=1 // pred_fallthru
      _
    %482 = vsyncpa [#allocation4], 1
    %483 = vsyncpa [#allocation7], 1
    %484 = vsyncpa [#allocation10], 1
    %485 = vsyncpa [#allocation5], 1
    %486 = vsyncpa [#allocation14], 1

</llo_original>
